<compile_context>
chip_gen: v5e
topology: v5e:2x2
jax: 0.10.0
libtpu: 0.0.40
codegen_flags: <defaults>
</compile_context>

<pallas_src>
import jax
import jax.numpy as jnp
from jax import lax
from jax.experimental import pallas as pl
from jax.experimental.pallas import tpu as pltpu


def _dp_conv_kernel(p_ref, w_ref, b_ref, o_ref):
    """One grid step == one (device replica, image, H*W tile) work item.

    p_ref: (1, K, hw_tile)      bf16 im2col patches; lane axis = spatial tile (dense)
    w_ref: (Cout, K)            bf16 flattened conv weight (VMEM-resident, replicated)
    b_ref: (Cout, 1)            f32 bias (replicated)
    o_ref: (1, Cout, hw_tile)   f32 output slot in (N, Cout, H*W) -> the gather target
    """
    # Single merged matmul on the MXU, f32 accumulation.
    acc = jnp.dot(w_ref[...], p_ref[0], preferred_element_type=jnp.float32)  # (Cout, hw)
    # Bias add once per block (broadcast over lanes); store in output dtype.
    o_ref[0] = (acc + b_ref[...]).astype(o_ref.dtype)


def data_parallel_conv3x3(x_nchw, weight, bias, num_devices=2, hw_tile=None,
                          compute_dtype=jnp.bfloat16):
    """Forward of _DataParallel(Conv2d(Cin, Cout, 3, padding=1, bias=True)).

    x_nchw: (N, Cin, H, W) float32
    weight: (Cout, Cin, 3, 3) float32   (PyTorch OIHW layout)
    bias:   (Cout,) float32
    """
    N, Cin, H, W = x_nchw.shape
    Cout, _, KH, KW = weight.shape
    assert N % num_devices == 0, "equal-chunk scatter along dim 0"
    chunk = N // num_devices
    HW = H * W
    K = KH * KW * Cin

    # Pick the largest lane-dense spatial tile (multiple of 128 dividing H*W), or the
    # full H*W if it is not a multiple of 128 (full-extent blocks are always legal).
    if hw_tile is None:
        hw_tile = HW
        if HW % 128 == 0:
            for cand in (2048, 1024, 512, 256, 128):
                if HW % cand == 0:
                    hw_tile = cand
                    break
    assert HW % hw_tile == 0, "hw_tile must divide H*W"
    n_hw = HW // hw_tile

    # --- glue (plain JAX): pad + im2col directly in (N, K, H*W) layout (no transposes) ---
    xp = jnp.pad(x_nchw, ((0, 0), (0, 0), (1, 1), (1, 1)))            # padding=1
    taps = [xp[:, :, dy:dy + H, dx:dx + W] for dy in range(KH) for dx in range(KW)]
    # (N, KH*KW, Cin, H, W) -> (N, K, H*W), k = (dy*KW+dx)*Cin + cin
    patches = jnp.stack(taps, axis=1).reshape(N, K, HW).astype(compute_dtype)
    # OIHW -> (Cout, KH, KW, Cin) -> (Cout, K), matching the patch k ordering
    w2d = weight.transpose(0, 2, 3, 1).reshape(Cout, K).astype(compute_dtype)
    b2d = bias.reshape(Cout, 1).astype(jnp.float32)

    # --- hot path in Pallas --------------------------------------------------------------
    # grid = (device replicas, images per replica, spatial tiles per image)
    out = pl.pallas_call(
        _dp_conv_kernel,
        out_shape=jax.ShapeDtypeStruct((N, Cout, HW), jnp.float32),
        grid_spec=pltpu.PrefetchScalarGridSpec(
            num_scalar_prefetch=0,
            grid=(num_devices, chunk, n_hw),
            in_specs=[
                # scatter: device d handles images [d*chunk, (d+1)*chunk)
                pl.BlockSpec((1, K, hw_tile), lambda d, n, m: (d * chunk + n, 0, m)),
                # replicate: same weight/bias block every step (DMA'd once, kept in VMEM)
                pl.BlockSpec((Cout, K), lambda d, n, m: (0, 0)),
                pl.BlockSpec((Cout, 1), lambda d, n, m: (0, 0)),
            ],
            # gather: each device writes its own batch slots along dim 0 (lane-dense vst)
            out_specs=pl.BlockSpec((1, Cout, hw_tile), lambda d, n, m: (d * chunk + n, 0, m)),
        ),
        compiler_params=pltpu.CompilerParams(
            # no cross-step reduction anywhere -> every axis is independent work
            dimension_semantics=("parallel", "parallel", "parallel"),
            vmem_limit_bytes=32 * 1024 * 1024,  # tiny blocks; safe on v5e/v6e/v7x
        ),
    )(patches, w2d, b2d)

    # (N, Cout, H*W) -> (N, Cout, H, W): pure metadata reshape, no transpose, no slice.
    return out.reshape(N, Cout, H, W).astype(x_nchw.dtype)


if __name__ == "__main__":
    key = jax.random.PRNGKey(0)
    kx, kw, kb = jax.random.split(key, 3)

    N, Cin, H, W = 4, 4, 16, 16
    Cout, KH, KW = 8, 3, 3
    num_devices = 2  # simulated device_ids = [0, 1]

    x = jax.random.normal(kx, (N, Cin, H, W), dtype=jnp.float32)
    fan_in = Cin * KH * KW
    weight = jax.random.normal(kw, (Cout, Cin, KH, KW), dtype=jnp.float32) / jnp.sqrt(fan_in)
    bias = jax.random.normal(kb, (Cout,), dtype=jnp.float32) * 0.1

    # hw_tile auto-picks 256 (= full H*W) here -> 1 lane-dense tile per image,
    # 2 pipelined steps per simulated device replica.
    y = data_parallel_conv3x3(x, weight, bias, num_devices=num_devices)
    y = jax.block_until_ready(y)

    # reference: plain XLA conv (same math DataParallel would produce on one device), f32
    y_ref = lax.conv_general_dilated(
        x, weight, window_strides=(1, 1), padding="SAME",
        dimension_numbers=("NCHW", "OIHW", "NCHW"),
    ) + bias.reshape(1, Cout, 1, 1)

    assert y.shape == (N, Cout, H, W)
    max_err = float(jnp.max(jnp.abs(y - y_ref)))
    # bf16 inputs with f32 accumulation: small rounding error vs the f32 reference
    assert jnp.allclose(y, y_ref, atol=5e-2, rtol=5e-2), \
        f"mismatch vs reference conv (max abs err {max_err})"
    print("KERNEL_OK")
</pallas_src>

<mosaic_0001>
module attributes {stable_mosaic.version = 11 : i64} {
  func.func @_dp_conv_kernel(%arg0: i32, %arg1: i32, %arg2: i32, %arg3: memref<1x36x256xbf16, #tpu.memory_space<vmem>>, %arg4: memref<8x36xbf16, #tpu.memory_space<vmem>>, %arg5: memref<8x1xf32, #tpu.memory_space<vmem>>, %arg6: memref<1x8x256xf32, #tpu.memory_space<vmem>>) attributes {dimension_semantics = [#tpu.dimension_semantics<parallel>, #tpu.dimension_semantics<parallel>, #tpu.dimension_semantics<parallel>], iteration_bounds = array<i64: 2, 2, 1>, scalar_prefetch = 0 : i64, scratch_operands = 0 : i64, tpu.core_type = #tpu.core_type<tc>, window_params = [{transform_indices = @transform_0, window_bounds = array<i64: 1, 36, 256>}, {pipeline_mode = #tpu.pipeline_mode<synchronous>, transform_indices = @transform_1, window_bounds = array<i64: 8, 36>}, {pipeline_mode = #tpu.pipeline_mode<synchronous>, transform_indices = @transform_2, window_bounds = array<i64: 8, 1>}, {transform_indices = @transform_3, window_bounds = array<i64: 1, 8, 256>}]} {
    %c0 = arith.constant 0 : index
    %c0_0 = arith.constant 0 : index
    %0 = vector.load %arg4[%c0, %c0_0] : memref<8x36xbf16, #tpu.memory_space<vmem>>, vector<8x36xbf16>
    %c0_1 = arith.constant 0 : index
    %c0_2 = arith.constant 0 : index
    %c0_3 = arith.constant 0 : index
    %1 = vector.load %arg3[%c0_1, %c0_2, %c0_3] : memref<1x36x256xbf16, #tpu.memory_space<vmem>>, vector<1x36x256xbf16>
    %2 = vector.shape_cast %1 : vector<1x36x256xbf16> to vector<36x256xbf16>
    %cst = arith.constant dense<0.000000e+00> : vector<8x256xf32>
    %3 = tpu.matmul %0, %2, %cst {dimension_numbers = #tpu.dot_dimension_numbers<[1], [0], [0], [1], [0, 0, 1, 1], [], []>} : vector<8x36xbf16>, vector<36x256xbf16>, vector<8x256xf32> -> vector<8x256xf32>
    %c0_4 = arith.constant 0 : index
    %c0_5 = arith.constant 0 : index
    %4 = vector.load %arg5[%c0_4, %c0_5] : memref<8x1xf32, #tpu.memory_space<vmem>>, vector<8x1xf32>
    %5 = vector.broadcast %4 : vector<8x1xf32> to vector<8x256xf32>
    %6 = arith.addf %3, %5 : vector<8x256xf32>
    %c0_6 = arith.constant 0 : index
    %c0_7 = arith.constant 0 : index
    %c0_8 = arith.constant 0 : index
    %7 = vector.load %arg6[%c0_6, %c0_7, %c0_8] : memref<1x8x256xf32, #tpu.memory_space<vmem>>, vector<1x8x256xf32>
    %8 = vector.shape_cast %7 : vector<1x8x256xf32> to vector<8x256xf32>
    %9 = vector.shape_cast %6 : vector<8x256xf32> to vector<1x8x256xf32>
    tpu.vector_store %arg6[%c0_6, %c0_7, %c0_8], %9 {strides = array<i32>} : memref<1x8x256xf32, #tpu.memory_space<vmem>>, vector<1x8x256xf32>,
    return
  }
  func.func @transform_0(%arg0: i32, %arg1: i32, %arg2: i32) -> (i32, i32, i32) {
    %c2_i32 = arith.constant 2 : i32
    %0 = arith.muli %arg0, %c2_i32 : i32
    %1 = arith.addi %0, %arg1 : i32
    %c0_i32 = arith.constant 0 : i32
    %c0_i32_0 = arith.constant 0 : i32
    return %1, %c0_i32, %arg2 : i32, i32, i32
  }
  func.func @transform_1(%arg0: i32, %arg1: i32, %arg2: i32) -> (i32, i32) {
    %c0_i32 = arith.constant 0 : i32
    %c0_i32_0 = arith.constant 0 : i32
    %c0_i32_1 = arith.constant 0 : i32
    return %c0_i32, %c0_i32_0 : i32, i32
  }
  func.func @transform_2(%arg0: i32, %arg1: i32, %arg2: i32) -> (i32, i32) {
    %c0_i32 = arith.constant 0 : i32
    %c0_i32_0 = arith.constant 0 : i32
    %c0_i32_1 = arith.constant 0 : i32
    return %c0_i32, %c0_i32_0 : i32, i32
  }
  func.func @transform_3(%arg0: i32, %arg1: i32, %arg2: i32) -> (i32, i32, i32) {
    %c2_i32 = arith.constant 2 : i32
    %0 = arith.muli %arg0, %c2_i32 : i32
    %1 = arith.addi %0, %arg1 : i32
    %c0_i32 = arith.constant 0 : i32
    %c0_i32_0 = arith.constant 0 : i32
    return %1, %c0_i32, %arg2 : i32, i32, i32
  }
}

</mosaic_0001>

<llo_original>
// kernel: tpu_custom_call.1
$region0: #{tpu_custom_call.1}
  #allocation0 [shape = 'u32[]', space=smem, size = 0x4, offset = 0x4, fixed_abs, tag = 'smem constant byte address 0x4 - core index']
  #allocation1 [shape = 'u32[72,128]{1,0:T(1,128)}', space=vmem, size = 0x9000, scoped, tag = 'internal scratch']
  %s0 = inlined_call_operand.vmem [shape: bf16[4,36,256], index: 0, kind: input, shape index: {}]
  %s1 = inlined_call_operand.vmem [shape: bf16[8,36], index: 1, kind: input, shape index: {}]
  %s2 = inlined_call_operand.vmem [shape: f32[8,1], index: 2, kind: input, shape index: {}]
  %s3 = inlined_call_operand.hbm [shape: f32[4,8,256], index: 3, kind: output, shape index: {}]
  %s4 = sld [smem:[#allocation0]]
  $region45: #{tpu_custom_call.1} parent=0
    _
  %s6 = ssub.s32 1, %s4
  %s7 = scalar_select 0, %s6, %s4
  $region1: #{tpu_custom_call.1} parent=0
    #allocation2 [shape = 'u8[16384]{0}', space=vmem, size = 0x4000, scoped, tag = 'output window, operand 0']
    #allocation3 [shape = 's32[2]{0}', space=sflag, size = 0x8, scoped, tag = 'scoped memory for tpu_custom_call.1']
    %8 = vsyncpa [#allocation3], 0
    %s9 = scalar_lea.sflag [#allocation3], 1
    %10 = vsyncpa %s9, 0
    loop: start=0, step=1, limit=6
    $region2: #{tpu_custom_call.1} parent=1 // loop_pre_header
      _
    $region3: #{tpu_custom_call.1} parent=1 // loop_header
      %s12 = sphi 0, %s16
      %p13 = scmp.ge.s32.totalorder %s12, 6
      %s19 = sphi 0, %s38
      %s20 = sphi 0, %s34
      %s21 = sphi 0, %s30
      %s22 = sphi 0, %s19
      %s23 = sphi 0, %s20
      %s24 = sphi 0, %s21
      %s25 = sphi 0, %s22
      %s26 = sphi 0, %s23
      %s27 = sphi 0, %s24
      %s47 = sphi 0, %s49
      %s50 = sphi 0, %s47
      %s51 = sphi 0, %s50
      %s67 = sphi 0, %s51
      %s71 = sphi 0, %s71
      %s73 = sphi 0, %s71
      %s74 = sphi 0, %s73
      %s88 = sphi 0, %s74
      %s92 = sphi 0, %s92
      %s94 = sphi 0, %s92
      %s95 = sphi 0, %s94
      %s109 = sphi 0, %s95
      %s121 = sphi 0, %s123
      %s124 = sphi 0, %s121
      %s125 = sphi 0, %s124
      %s141 = sphi 0, %s125
    $region4: #{tpu_custom_call.1} parent=1 // loop_header_branch
      %15 = sbr.rel (%p13) target = $region8
    $region5: #{tpu_custom_call.1} parent=1 // loop_body
      %s17 = ssub.s32 %s12, 1
      %s18 = ssub.s32 %s12, 2
      %s28 = sadd.s32 1, %s21
      %p29 = scmp.ge.s32.totalorder %s28, 1
      %s30 = scalar_select %p29, 0, %s28
      %s31 = sadd.s32 1, %s20
      %s32 = scalar_select %p29, %s31, %s20
      %p33 = scmp.ge.s32.totalorder %s32, 2
      %s34 = scalar_select %p33, 0, %s32
      %s35 = sadd.s32 1, %s19
      %s36 = scalar_select %p33, %s35, %s19
      %p37 = scmp.ge.s32.totalorder %s36, 2
      %s38 = scalar_select %p37, 0, %s36
      %s39 = smul.u32 %s19, 2
      %s40 = sadd.s32 %s39, %s20
      %s41 = smul.u32 %s38, 2
      %s42 = sadd.s32 %s41, %s34
      %s43 = ssub.s32 %s40, %s42
      %s44 = ssub.s32 %s21, %s30
      %s45 = sor.u32 %s43, %s44
      %p46 = scmp.eq.s32.totalorder %s45, 0
      %s48 = sadd.s32 %s47, 1
      %s49 = scalar_select %p46, %s47, %s48
      %p52 = pneg %p46
      %p53 = scmp.eq.s32.totalorder %s12, 3
      %p54 = por %p52, %p53
      %p55 = scmp.ne.s32.totalorder %s47, %s50
      %p56 = scmp.eq.s32.totalorder %s12, 0
      %p57 = por %p55, %p56
      %p58 = scmp.ne.s32.totalorder %s47, %s50
      %p59 = scmp.eq.s32.totalorder %s17, 3
      %p60 = por %p58, %p59
      %p61 = scmp.ne.s32.totalorder %s50, %s51
      %p62 = scmp.eq.s32.totalorder %s17, 0
      %p63 = por %p61, %p62
      %p64 = scmp.ne.s32.totalorder %s50, %s51
      %p65 = scmp.eq.s32.totalorder %s18, 3
      %p66 = por %p64, %p65
      %p68 = scmp.ne.s32.totalorder %s51, %s67
      %p69 = scmp.eq.s32.totalorder %s18, 0
      %p70 = por %p68, %p69
      %s72 = sadd.s32 %s71, 1
      %p75 = scmp.eq.s32.totalorder %s12, 3
      %p76 = scmp.ne.s32.totalorder %s71, %s73
      %p77 = scmp.eq.s32.totalorder %s12, 0
      %p78 = por %p76, %p77
      %p79 = scmp.ne.s32.totalorder %s71, %s73
      %p80 = scmp.eq.s32.totalorder %s17, 3
      %p81 = por %p79, %p80
      %p82 = scmp.ne.s32.totalorder %s73, %s74
      %p83 = scmp.eq.s32.totalorder %s17, 0
      %p84 = por %p82, %p83
      %p85 = scmp.ne.s32.totalorder %s73, %s74
      %p86 = scmp.eq.s32.totalorder %s18, 3
      %p87 = por %p85, %p86
      %p89 = scmp.ne.s32.totalorder %s74, %s88
      %p90 = scmp.eq.s32.totalorder %s18, 0
      %p91 = por %p89, %p90
      %s93 = sadd.s32 %s92, 1
      %p96 = scmp.eq.s32.totalorder %s12, 3
      %p97 = scmp.ne.s32.totalorder %s92, %s94
      %p98 = scmp.eq.s32.totalorder %s12, 0
      %p99 = por %p97, %p98
      %p100 = scmp.ne.s32.totalorder %s92, %s94
      %p101 = scmp.eq.s32.totalorder %s17, 3
      %p102 = por %p100, %p101
      %p103 = scmp.ne.s32.totalorder %s94, %s95
      %p104 = scmp.eq.s32.totalorder %s17, 0
      %p105 = por %p103, %p104
      %p106 = scmp.ne.s32.totalorder %s94, %s95
      %p107 = scmp.eq.s32.totalorder %s18, 3
      %p108 = por %p106, %p107
      %p110 = scmp.ne.s32.totalorder %s95, %s109
      %p111 = scmp.eq.s32.totalorder %s18, 0
      %p112 = por %p110, %p111
      %s113 = smul.u32 %s19, 2
      %s114 = sadd.s32 %s113, %s20
      %s115 = smul.u32 %s38, 2
      %s116 = sadd.s32 %s115, %s34
      %s117 = ssub.s32 %s114, %s116
      %s118 = ssub.s32 %s21, %s30
      %s119 = sor.u32 %s117, %s118
      %p120 = scmp.eq.s32.totalorder %s119, 0
      %s122 = sadd.s32 %s121, 1
      %s123 = scalar_select %p120, %s121, %s122
      %p126 = pneg %p120
      %p127 = scmp.eq.s32.totalorder %s12, 3
      %p128 = por %p126, %p127
      %p129 = scmp.ne.s32.totalorder %s121, %s124
      %p130 = scmp.eq.s32.totalorder %s12, 0
      %p131 = por %p129, %p130
      %p132 = scmp.ne.s32.totalorder %s121, %s124
      %p133 = scmp.eq.s32.totalorder %s17, 3
      %p134 = por %p132, %p133
      %p135 = scmp.ne.s32.totalorder %s124, %s125
      %p136 = scmp.eq.s32.totalorder %s17, 0
      %p137 = por %p135, %p136
      %p138 = scmp.ne.s32.totalorder %s124, %s125
      %p139 = scmp.eq.s32.totalorder %s18, 3
      %p140 = por %p138, %p139
      %p142 = scmp.ne.s32.totalorder %s125, %s141
      %p143 = scmp.eq.s32.totalorder %s18, 0
      %p144 = por %p142, %p143
      %p145 = scmp.le.s32.totalorder 1, %s12
      %p146 = scmp.lt.s32.totalorder %s12, 5
      %p147 = pnand %p145, %p146
      %p148 = pneg %p147
      // Predicated region
      $region9: #{tpu_custom_call.1} parent=5 // pred_check
        _
      $region10: #{tpu_custom_call.1} parent=5 // pred_check_branch
        %150 = sbr.rel (%p147) target = $region12
      $region11: #{tpu_custom_call.1} parent=5 // pred_region
        %s151 = ssub.s32 %s12, 1
        // Predicated region
        $region13: #{tpu_custom_call.1} parent=11 // pred_check
          %p152 = pneg %p84
        $region14: #{tpu_custom_call.1} parent=11 // pred_check_branch
          %154 = sbr.rel (%p152) target = $region16
        $region15: #{tpu_custom_call.1} parent=11 // pred_region
          _
        $region16: #{tpu_custom_call.1} parent=11 // pred_fallthru
          _
        // Predicated region
        $region17: #{tpu_custom_call.1} parent=11 // pred_check
          %p155 = pneg %p105
        $region18: #{tpu_custom_call.1} parent=11 // pred_check_branch
          %157 = sbr.rel (%p155) target = $region20
        $region19: #{tpu_custom_call.1} parent=11 // pred_region
          _
        $region20: #{tpu_custom_call.1} parent=11 // pred_fallthru
          _
      $region12: #{tpu_custom_call.1} parent=5 // pred_fallthru
        _
      %p158 = scmp.lt.s32.totalorder %s12, 4
      // Predicated region
      $region21: #{tpu_custom_call.1} parent=5 // pred_check
        %p159 = pneg %p158
      $region22: #{tpu_custom_call.1} parent=5 // pred_check_branch
        %161 = sbr.rel (%p159) target = $region24
      $region23: #{tpu_custom_call.1} parent=5 // pred_region
        // Predicated region
        $region25: #{tpu_custom_call.1} parent=23 // pred_check
          %p162 = pneg %p57
        $region26: #{tpu_custom_call.1} parent=23 // pred_check_branch
          %164 = sbr.rel (%p162) target = $region28
        $region27: #{tpu_custom_call.1} parent=23 // pred_region
          %s165 = smul.u32 %s19, 2
          %s166 = sadd.s32 %s165, %s20
          %s167 = smul.u32 2, %s21
          %p168 = scmp.lt.s32.totalorder %s166, 3
          %s169 = scalar_select %p168, %s166, 3
          %p170 = scmp.lt.s32.totalorder %s167, 1
          %s171 = scalar_select %p170, %s167, 1
          %s172 = smul.addr %s169, 10
          %s173 = sadd.s32 %s171, %s172
          %s174 = smul.addr %s173, 4
          %s175 = scalar_lea.vmem %s0, %s174
          %s176 = smul.u32 %s19, 2
          %s177 = sadd.s32 %s176, %s20
          %s178 = smul.u32 2, %s21
        $region28: #{tpu_custom_call.1} parent=23 // pred_fallthru
          _
      $region24: #{tpu_custom_call.1} parent=5 // pred_fallthru
        _
      %p179 = scmp.le.s32.totalorder 1, %s12
      %p180 = scmp.lt.s32.totalorder %s12, 5
      %p181 = pnand %p179, %p180
      %p182 = pneg %p181
      // Predicated region
      $region29: #{tpu_custom_call.1} parent=5 // pred_check
        _
      $region30: #{tpu_custom_call.1} parent=5 // pred_check_branch
        %184 = sbr.rel (%p181) target = $region32
      $region31: #{tpu_custom_call.1} parent=5 // pred_region
        %s185 = ssub.s32 %s12, 1
        %s186 = smul.u32 %s22, 2
        %s187 = sadd.s32 %s186, %s23
        %s188 = smul.u32 2, %s24
        %p189 = scmp.lt.s32.totalorder %s187, 3
        %s190 = scalar_select %p189, %s187, 3
        %p191 = scmp.lt.s32.totalorder %s188, 1
        %s192 = scalar_select %p191, %s188, 1
        %s193 = smul.addr %s190, 10
        %s194 = sadd.s32 %s192, %s193
        %s195 = smul.addr %s194, 4
        %s196 = scalar_lea.vmem %s0, %s195
        %p197 = pneg %p63
        %p198 = pneg %p60
        %p199 = pneg %p84
        %p200 = pneg %p81
        %p201 = pneg %p105
        %p202 = pneg %p102
        %p203 = pneg %p137
        %p204 = pneg %p134
        %s205 = sand.u32 %s124, 1
        %s206 = scalar_lea.sflag [#allocation3], %s205
        %s207 = sand.u32 %s124, 1
        %s208 = smul.addr %s207, 16
        %s209 = scalar_lea.vmem [#allocation2], %s208
        %s210 = smul.u32 %s22, 2
        %s211 = sadd.s32 %s210, %s23
        %s212 = smul.u32 2, %s24
        %p213 = scmp.lt.s32.totalorder %s211, 3
        %s214 = scalar_select %p213, %s211, 3
        %p215 = scmp.lt.s32.totalorder %s212, 1
        %s216 = scalar_select %p215, %s212, 1
        %s217 = smul.addr %s214, 10
        %s218 = sadd.s32 %s216, %s217
        %s219 = smul.addr %s218, 4
        %s220 = scalar_lea.vmem %s0, %s219
        %s221 = smul.u32 %s22, 2
        %s222 = sadd.s32 %s221, %s23
        %s223 = smul.u32 2, %s24
        %s224 = smul.u32 %s22, 2
        %s225 = sadd.s32 %s224, %s23
        %s226 = smul.u32 2, %s24
        %v228 = vld [vmem:[%s1] sm:$0xf]
        %v229 = vld [vmem:[%s220] sm:$0xff]
        %v230 = vld [vmem:[%s220 + $0x8] sm:$0xff]
        %v231 = vld [vmem:[%s220 + $0x10] sm:$0xff]
        %v232 = vld [vmem:[%s220 + $0x18] sm:$0xff]
        %v233 = vld [vmem:[%s220 + $0x20] sm:$0x33]
        %v234 = vld [vmem:[%s2] sm:$0xff]
        %236 = vset.pattern.permute.xlu0 0
        %237 = vperm.xlu0 %236, %v234
        %v238 = vpop.permute.xlu0 %237
        %v245 = vunpack.c.l.b16 %v229
        %v246 = vunpack.c.h.b16 %v229
        %v247 = vunpack.c.l.b16 %v230
        %v248 = vunpack.c.h.b16 %v230
        %v249 = vunpack.c.l.b16 %v231
        %v250 = vunpack.c.h.b16 %v231
        %v251 = vunpack.c.l.b16 %v232
        %v252 = vunpack.c.h.b16 %v232
        %v253 = vunpack.c.l.b16 %v233
        %v254 = vunpack.c.h.b16 %v233
        %v255 = vpack.c.b16 %v247, %v245
        %v256 = vpack.c.b16 %v248, %v246
        %v257 = vpack.c.b16 %v251, %v249
        %v258 = vpack.c.b16 %v252, %v250
        %v259 = vpack.c.b16 %v253, %v253
        %v260 = vpack.c.b16 %v254, %v254
        %vm265 = vcmask 293888
        %v267 = vsel %vm265, %v228, 0
        %vm269 = vcmask 1041408
        %v271 = vsel %vm269, %v259, 0
        %v274 = vsel %vm269, %v260, 0
        %276 = vmatpush.bf16.msra.mxu0 0
        %277 = vmatpush.bf16.msra.mxu0 0
        %278 = vmatpush.bf16.msra.mxu0 0
        %279 = vmatpush.bf16.msra.mxu0 0
        %280 = vmatpush.bf16.msra.mxu0 0
        %281 = vmatpush.bf16.msra.mxu0 %v271
        %282 = vmatpush.bf16.msra.mxu0 %v257
        %283 = vmatpush.bf16.msra.mxu0 %v255
        %284 = vmatmul.bf16.gmra.mxu0 %v267
        %v285 = vpop.f32.mrf.mxu0
        %v286 = vadd.f32 %v238, %v285
        %v287 = vpop.f32.mrf.mxu0
        %288 = vdwg.mxu0
        %289 = vmatpush.bf16.msra.mxu0 0
        %290 = vmatpush.bf16.msra.mxu0 0
        %291 = vmatpush.bf16.msra.mxu0 0
        %292 = vmatpush.bf16.msra.mxu0 0
        %293 = vmatpush.bf16.msra.mxu0 0
        %294 = vmatpush.bf16.msra.mxu0 %v274
        %295 = vmatpush.bf16.msra.mxu0 %v258
        %296 = vmatpush.bf16.msra.mxu0 %v256
        %297 = vmatmul.bf16.gmra.mxu0 %v267
        %v298 = vpop.f32.mrf.mxu0
        %v299 = vadd.f32 %v238, %v298
        %v300 = vpop.f32.mrf.mxu0
        %301 = vdwg.mxu0
        %302 = vst [vmem:[%s209] sm:$0xff] %v286
        %303 = vst [vmem:[%s209 + $0x8] sm:$0xff] %v299
        %s304 = sand.u32 %s124, 1
        %s305 = scalar_lea.sflag [#allocation3], %s304
        %s306 = sand.u32 %s124, 1
        %s307 = smul.addr %s306, 16
        %s308 = scalar_lea.vmem [#allocation2], %s307
        // Predicated region
        $region33: #{tpu_custom_call.1} parent=31 // pred_check
          %p309 = pneg %p134
        $region34: #{tpu_custom_call.1} parent=31 // pred_check_branch
          %311 = sbr.rel (%p309) target = $region36
        $region35: #{tpu_custom_call.1} parent=31 // pred_region
          %s312 = smul.u32 %s22, 2
          %s313 = sadd.s32 %s312, %s23
          %s314 = smul.u32 2, %s24
          %316 = vsyncadd %s305, 0
          %s317 = smul.addr %s313, 2
          %s318 = sadd.s32 %s314, %s317
          %s319 = smul.addr %s318, 8
          %s320 = scalar_lea.hbm %s3, %s319
          %s322 = sshll.u32 %s308, 4
          %s323 = int_to_ptr.vmem [resolvable:$true] %s322
          %s324 = sshll.u32 %s320, 4
          %s325 = int_to_ptr.hbm [resolvable:$true] %s324
          %327 = dma.vmem_to_hbm [thread:$0]  %s323, 256, %s325, %s305
        $region36: #{tpu_custom_call.1} parent=31 // pred_fallthru
          _
      $region32: #{tpu_custom_call.1} parent=5 // pred_fallthru
        _
      %p328 = scmp.le.s32.totalorder 2, %s12
      // Predicated region
      $region37: #{tpu_custom_call.1} parent=5 // pred_check
        %p329 = pneg %p328
      $region38: #{tpu_custom_call.1} parent=5 // pred_check_branch
        %331 = sbr.rel (%p329) target = $region40
      $region39: #{tpu_custom_call.1} parent=5 // pred_region
        %s332 = ssub.s32 %s12, 2
        // Predicated region
        $region41: #{tpu_custom_call.1} parent=39 // pred_check
          %p333 = pneg %p140
        $region42: #{tpu_custom_call.1} parent=39 // pred_check_branch
          %335 = sbr.rel (%p333) target = $region44
        $region43: #{tpu_custom_call.1} parent=39 // pred_region
          %s336 = sand.u32 %s125, 1
          %s337 = scalar_lea.sflag [#allocation3], %s336
          %s338 = sand.u32 %s125, 1
          %s339 = smul.addr %s338, 16
          %s340 = scalar_lea.vmem [#allocation2], %s339
          %342 = dma.done %s337, 256
        $region44: #{tpu_custom_call.1} parent=39 // pred_fallthru
          _
      $region40: #{tpu_custom_call.1} parent=5 // pred_fallthru
        _
    $region6: #{tpu_custom_call.1} parent=1 // loop_footer
      %s16 = sadd.s32 1, %s12
    $region7: #{tpu_custom_call.1} parent=1 // loop_footer_branch
      %11 = sbr.rel target = $region3
    $region8: #{tpu_custom_call.1} parent=1 // loop_exit
      _
    %343 = vsyncpa [#allocation3], 1
    %s344 = scalar_lea.sflag [#allocation3], 1
    %345 = vsyncpa %s344, 1

</llo_original>
